<compile_context>
chip_gen: v5e
topology: v5e:2x2
jax: 0.10.0
libtpu: 0.0.40
codegen_flags: <defaults>
</compile_context>

<pallas_src>
import functools

import jax
import jax.numpy as jnp
from jax import lax
from jax.experimental import pallas as pl
from jax.experimental.pallas import tpu as pltpu

BN_EPS = 1e-5
_VMEM_FLOOR = 16 * 1024 * 1024   # v5e scoped default is only 16 MiB -> explicit limit
_VMEM_CAP = 48 * 1024 * 1024     # stays under v7x's 64 MiB physical VMEM
_TM_MAX = 512                    # sweepable row tile cap
_TN_MAX = 2048                   # N tile cap (keeps weight/output blocks bounded)
_MIN_ROW_TILES = 8               # keep both v7x TensorCores busy + hide DMA latency


def _round_up(x, m):
    return (x + m - 1) // m * m


# --------------------- optional single-buffered weight spec ---------------------

_SINGLE_BUFFER_OK = None


def _copy_kernel(x_ref, o_ref):
    o_ref[...] = x_ref[...]


def _single_buffer_weight_supported():
    """Probe once whether BlockSpec(pipeline_mode=pl.Buffered(1)) lowers here."""
    global _SINGLE_BUFFER_OK
    if _SINGLE_BUFFER_OK is None:
        try:
            spec = pl.BlockSpec((8, 128), lambda i: (0, 0),
                                pipeline_mode=pl.Buffered(1))
            out = pl.pallas_call(
                _copy_kernel,
                out_shape=jax.ShapeDtypeStruct((8, 128), jnp.float32),
                grid=(1,),
                in_specs=[spec],
                out_specs=pl.BlockSpec((8, 128), lambda i: (0, 0)),
            )(jnp.ones((8, 128), jnp.float32))
            jax.block_until_ready(out)
            _SINGLE_BUFFER_OK = True
        except Exception:
            _SINGLE_BUFFER_OK = False
    return _SINGLE_BUFFER_OK


def _weight_spec(block_shape, index_map):
    # Weight block index is constant along the inner (row) grid axis; a second
    # pipeline buffer would be wasted VMEM (matters most on v7x's 64 MiB).
    if _single_buffer_weight_supported():
        return pl.BlockSpec(block_shape, index_map, pipeline_mode=pl.Buffered(1))
    return pl.BlockSpec(block_shape, index_map)


# ------------------------------ Pallas kernels ------------------------------

def _pack_stats(y, stats_ref):
    """Pack channel sum (sublane 0) and sum-of-squares (sublane 1) into one
    lane-dense (8, tn) slab; remaining sublanes are zero."""
    s = jnp.sum(y, axis=0, keepdims=True)          # (1, tn), f32
    sq = jnp.sum(y * y, axis=0, keepdims=True)     # (1, tn), f32
    sub = lax.broadcasted_iota(jnp.int32, stats_ref.shape[1:], 0)
    stats_ref[0] = jnp.where(sub == 0, s, jnp.where(sub == 1, sq, 0.0))


def _matmul_stats_kernel(x_ref, w_ref, stats_ref, *, m_total, tm):
    """Row/N-tiled MXU matmul that emits ONLY BN partial statistics (no y store)."""
    i = pl.program_id(1)                                        # row-tile (inner axis)
    row = i * tm + lax.broadcasted_iota(jnp.int32, (tm, 1), 0)
    x = jnp.where(row < m_total, x_ref[...], 0)                 # mask ragged tail rows
    y = jnp.dot(x, w_ref[...], preferred_element_type=jnp.float32)
    _pack_stats(y, stats_ref)


def _matmul_stats_y_kernel(x_ref, w_ref, y_ref, stats_ref, *, m_total, tm):
    """As above but also stores the linear output (used when K is large enough
    that recomputing the matmul in the epilogue would cost more than y traffic)."""
    i = pl.program_id(1)
    row = i * tm + lax.broadcasted_iota(jnp.int32, (tm, 1), 0)
    x = jnp.where(row < m_total, x_ref[...], 0)
    y = jnp.dot(x, w_ref[...], preferred_element_type=jnp.float32)
    y_ref[...] = y.astype(y_ref.dtype)
    _pack_stats(y, stats_ref)


def _matmul_scale_relu_kernel(x_ref, w_ref, scale_ref, shift_ref, o_ref):
    """out = relu((x @ w) * scale + shift): matmul fused with BN-normalize
    (or bias-add when scale==1, shift==bias)."""
    y = jnp.dot(x_ref[...], w_ref[...], preferred_element_type=jnp.float32)
    o_ref[...] = jnp.maximum(y * scale_ref[...] + shift_ref[...], 0.0).astype(o_ref.dtype)


def _scale_relu_kernel(y_ref, scale_ref, shift_ref, o_ref):
    """out = relu(y * scale + shift) on a stored linear-output tile."""
    y = y_ref[...].astype(jnp.float32)
    o_ref[...] = jnp.maximum(y * scale_ref[...] + shift_ref[...], 0.0).astype(o_ref.dtype)


# ------------------------------ host-side helpers ------------------------------

def _pick_tm(m):
    # Aim for >= _MIN_ROW_TILES grid steps (megacore + pipeline overlap), never
    # below 8 rows per tile, never above _TM_MAX.
    return max(8, min(_TM_MAX, _round_up(pl.cdiv(m, _MIN_ROW_TILES), 8)))


def _vmem_limit(block_bytes):
    # 2x for double buffering + headroom, clamped to a cap that is v7x-safe.
    return int(min(max(2 * block_bytes + (4 << 20), _VMEM_FLOOR), _VMEM_CAP))


def prepare_params(weight, bias, gamma=None, beta=None, *, batch_norm=True,
                   compute_dtype=jnp.bfloat16):
    """One-time (init-time) parameter prep: transpose W, pad N to a lane-dense
    multiple of the N tile, cast to the MXU compute dtype.  Hoisted out of the
    per-step hot path because parameters are static."""
    n, k = weight.shape
    n_pad = _round_up(n, 128)
    tn = min(n_pad, _TN_MAX)
    n_pad = _round_up(n_pad, tn)          # make the N grid exact
    wp = jnp.zeros((k, n_pad), compute_dtype).at[:, :n].set(weight.T.astype(compute_dtype))
    params = dict(w=wp, n=n, k=k, n_pad=n_pad, tn=tn,
                  compute_dtype=compute_dtype, batch_norm=batch_norm)
    if batch_norm:
        params["gamma"] = jnp.zeros((n_pad,), jnp.float32).at[:n].set(gamma.astype(jnp.float32))
        params["beta"] = jnp.zeros((n_pad,), jnp.float32).at[:n].set(beta.astype(jnp.float32))
        # NOTE: Linear bias dropped -- exactly cancelled by training-mode BN mean
        # subtraction (would have to be reinstated for eval/running-stats BN).
    else:
        params["bias"] = jnp.zeros((n_pad,), jnp.float32).at[:n].set(bias.astype(jnp.float32))
    return params


def linear_batch_relu(x, params, *, tm=None, recompute_k_threshold=512):
    """Apply Linear(+BatchNorm1d training stats)+ReLU.  x: (M, in_feature)."""
    m, k = x.shape
    assert k == params["k"]
    n, n_pad, tn = params["n"], params["n_pad"], params["tn"]
    cdt = params["compute_dtype"]
    w = params["w"]
    out_dtype = x.dtype
    xc = x.astype(cdt)                         # no padded x copy is ever made
    if tm is None:
        tm = _pick_tm(m)
    ni = pl.cdiv(m, tm)                        # ragged tail handled in-kernel / by OOB-drop
    nj = n_pad // tn
    it = jnp.dtype(cdt).itemsize
    o_bytes = jnp.dtype(out_dtype).itemsize

    grid = (nj, ni)                            # N outer -> weight fixed along inner axis
    sem = ("parallel", "parallel")             # no cross-step accumulation anywhere
    x_spec = pl.BlockSpec((tm, k), lambda j, i: (i, 0))
    w_spec = _weight_spec((k, tn), lambda j, i: (0, j))
    ss_spec = pl.BlockSpec((1, tn), lambda j, i: (0, j))
    o_spec = pl.BlockSpec((tm, tn), lambda j, i: (i, j))
    matmul_flops = 2 * m * k * n_pad

    if not params["batch_norm"]:
        # Single fused pass: out = relu(x @ w + bias).  No epilogue roundtrip.
        scale = jnp.ones((1, n_pad), jnp.float32)
        shift = params["bias"].reshape(1, n_pad)
        out = pl.pallas_call(
            _matmul_scale_relu_kernel,
            out_shape=jax.ShapeDtypeStruct((m, n_pad), out_dtype),
            grid_spec=pltpu.PrefetchScalarGridSpec(
                num_scalar_prefetch=0, grid=grid,
                in_specs=[x_spec, w_spec, ss_spec, ss_spec],
                out_specs=o_spec),
            compiler_params=pltpu.CompilerParams(
                dimension_semantics=sem,
                vmem_limit_bytes=_vmem_limit(
                    (tm * k + k * tn) * it + 2 * tn * 4 + tm * tn * o_bytes)),
            cost_estimate=pl.CostEstimate(
                flops=matmul_flops, transcendentals=0,
                bytes_accessed=(m * k + k * n_pad) * it + m * n_pad * o_bytes),
        )(xc, w, scale, shift)
        return out[:, :n]

    # ---------------- BN path, pass 1: matmul + fused BN partial statistics ----------------
    recompute = k <= recompute_k_threshold
    stats_shape = jax.ShapeDtypeStruct((ni, 8, n_pad), jnp.float32)
    stats_spec = pl.BlockSpec((1, 8, tn), lambda j, i: (i, 0, j))

    if recompute:
        # Small K: do NOT write y at all -- stats only; recompute matmul in pass 2.
        stats = pl.pallas_call(
            functools.partial(_matmul_stats_kernel, m_total=m, tm=tm),
            out_shape=stats_shape,
            grid_spec=pltpu.PrefetchScalarGridSpec(
                num_scalar_prefetch=0, grid=grid,
                in_specs=[x_spec, w_spec],
                out_specs=stats_spec),
            compiler_params=pltpu.CompilerParams(
                dimension_semantics=sem,
                vmem_limit_bytes=_vmem_limit((tm * k + k * tn) * it + 8 * tn * 4)),
            cost_estimate=pl.CostEstimate(
                flops=matmul_flops, transcendentals=0,
                bytes_accessed=(m * k + k * n_pad) * it + ni * 8 * n_pad * 4),
        )(xc, w)
        y = None
    else:
        # Large K: store y in the compute dtype (bf16 halves the roundtrip bytes).
        y, stats = pl.pallas_call(
            functools.partial(_matmul_stats_y_kernel, m_total=m, tm=tm),
            out_shape=(jax.ShapeDtypeStruct((m, n_pad), cdt), stats_shape),
            grid_spec=pltpu.PrefetchScalarGridSpec(
                num_scalar_prefetch=0, grid=grid,
                in_specs=[x_spec, w_spec],
                out_specs=[o_spec, stats_spec]),
            compiler_params=pltpu.CompilerParams(
                dimension_semantics=sem,
                vmem_limit_bytes=_vmem_limit(
                    (tm * k + k * tn + tm * tn) * it + 8 * tn * 4)),
            cost_estimate=pl.CostEstimate(
                flops=matmul_flops, transcendentals=0,
                bytes_accessed=(m * k + k * n_pad + m * n_pad) * it + ni * 8 * n_pad * 4),
        )(xc, w)

    # ---------------- tiny finalize: O(ni * n_pad), stays in XLA ----------------
    ch_sum = jnp.sum(stats[:, 0, :], axis=0)                    # (n_pad,)
    ch_sq = jnp.sum(stats[:, 1, :], axis=0)
    mean = ch_sum / m
    var = jnp.maximum(ch_sq / m - mean * mean, 0.0)             # biased var (PyTorch fwd)
    # TODO(synk): for very large |mean|/std a shifted/Welford finalize would be
    # safer against f32 cancellation (benign here because the bias is dropped).
    scale = (params["gamma"] * lax.rsqrt(var + BN_EPS)).reshape(1, n_pad)
    shift = (params["beta"].reshape(1, n_pad) - mean.reshape(1, n_pad) * scale)

    # ---------------- BN path, pass 2: normalize + ReLU ----------------
    if recompute:
        out = pl.pallas_call(
            _matmul_scale_relu_kernel,
            out_shape=jax.ShapeDtypeStruct((m, n_pad), out_dtype),
            grid_spec=pltpu.PrefetchScalarGridSpec(
                num_scalar_prefetch=0, grid=grid,
                in_specs=[x_spec, w_spec, ss_spec, ss_spec],
                out_specs=o_spec),
            compiler_params=pltpu.CompilerParams(
                dimension_semantics=sem,
                vmem_limit_bytes=_vmem_limit(
                    (tm * k + k * tn) * it + 2 * tn * 4 + tm * tn * o_bytes)),
            cost_estimate=pl.CostEstimate(
                flops=matmul_flops, transcendentals=0,
                bytes_accessed=(m * k + k * n_pad) * it + m * n_pad * o_bytes),
        )(xc, w, scale, shift)
    else:
        out = pl.pallas_call(
            _scale_relu_kernel,
            out_shape=jax.ShapeDtypeStruct((m, n_pad), out_dtype),
            grid_spec=pltpu.PrefetchScalarGridSpec(
                num_scalar_prefetch=0, grid=grid,
                in_specs=[o_spec, ss_spec, ss_spec],   # y tile + scale + shift
                out_specs=o_spec),
            compiler_params=pltpu.CompilerParams(
                dimension_semantics=sem,
                vmem_limit_bytes=_vmem_limit(tm * tn * (it + o_bytes) + 2 * tn * 4)),
        )(y, scale, shift)

    return out[:, :n]


# ------------------------- reference (pure JAX) -------------------------

def _reference(x, weight, bias, gamma, beta, batch_norm=True):
    y = x @ weight.T + bias
    if batch_norm:
        mean = jnp.mean(y, axis=0, keepdims=True)
        var = jnp.mean((y - mean) ** 2, axis=0, keepdims=True)
        y = (y - mean) * lax.rsqrt(var + BN_EPS)
        y = y * gamma + beta
    return jnp.maximum(y, 0.0)


if __name__ == "__main__":
    key = jax.random.PRNGKey(0)
    k_x, k_w, k_b, k_g, k_be = jax.random.split(key, 5)

    batch, in_feature, out_feature = 256, 32, 64

    x = jax.random.normal(k_x, (batch, in_feature), jnp.float32)
    limit = 1.0 / jnp.sqrt(in_feature)
    weight = jax.random.uniform(k_w, (out_feature, in_feature), jnp.float32, -limit, limit)
    bias = jax.random.uniform(k_b, (out_feature,), jnp.float32, -limit, limit)
    gamma = 1.0 + 0.1 * jax.random.normal(k_g, (out_feature,), jnp.float32)
    beta = 0.1 * jax.random.normal(k_be, (out_feature,), jnp.float32)

    ref_bn = _reference(x, weight, bias, gamma, beta, batch_norm=True)
    ref_nobn = _reference(x, weight, bias, gamma, beta, batch_norm=False)

    # 1) BN path, f32 compute, recompute epilogue (no y HBM roundtrip) -- tight check.
    p32 = prepare_params(weight, bias, gamma, beta, batch_norm=True,
                         compute_dtype=jnp.float32)
    out = jax.block_until_ready(linear_batch_relu(x, p32))
    assert out.shape == (batch, out_feature)
    assert jnp.allclose(out, ref_bn, atol=1e-4, rtol=1e-4), "bn/f32/recompute mismatch"

    # 2) BN path, f32 compute, stored-y epilogue (large-K code path, forced) -- tight check.
    out = jax.block_until_ready(linear_batch_relu(x, p32, recompute_k_threshold=0))
    assert jnp.allclose(out, ref_bn, atol=1e-4, rtol=1e-4), "bn/f32/stored-y mismatch"

    # 3) BN path, production-default bf16 compute (f32 MXU accumulation) -- loose check.
    p16 = prepare_params(weight, bias, gamma, beta, batch_norm=True)
    out = jax.block_until_ready(linear_batch_relu(x, p16))
    assert jnp.allclose(out, ref_bn, atol=5e-2, rtol=5e-2), "bn/bf16 mismatch"

    # 4) No-BN path: single fused matmul + bias + ReLU pass -- tight check.
    pnb = prepare_params(weight, bias, batch_norm=False, compute_dtype=jnp.float32)
    out = jax.block_until_ready(linear_batch_relu(x, pnb))
    assert jnp.allclose(out, ref_nobn, atol=1e-4, rtol=1e-4), "no-bn mismatch"

    print("KERNEL_OK")
</pallas_src>

<mosaic_0001>
module attributes {stable_mosaic.version = 11 : i64} {
  func.func @_copy_kernel(%arg0: i32, %arg1: memref<8x128xf32, #tpu.memory_space<vmem>>, %arg2: memref<8x128xf32, #tpu.memory_space<vmem>>) attributes {dimension_semantics = [#tpu.dimension_semantics<arbitrary>], iteration_bounds = array<i64: 1>, scalar_prefetch = 0 : i64, scratch_operands = 0 : i64, tpu.core_type = #tpu.core_type<tc>, window_params = [{pipeline_mode = #tpu.pipeline_mode<synchronous>, transform_indices = @transform_0, window_bounds = array<i64: 8, 128>}, {pipeline_mode = #tpu.pipeline_mode<synchronous>, transform_indices = @transform_1, window_bounds = array<i64: 8, 128>}]} {
    %c0 = arith.constant 0 : index
    %c0_0 = arith.constant 0 : index
    %0 = vector.load %arg1[%c0, %c0_0] : memref<8x128xf32, #tpu.memory_space<vmem>>, vector<8x128xf32>
    %c0_1 = arith.constant 0 : index
    %c0_2 = arith.constant 0 : index
    %1 = vector.load %arg2[%c0_1, %c0_2] : memref<8x128xf32, #tpu.memory_space<vmem>>, vector<8x128xf32>
    tpu.vector_store %arg2[%c0_1, %c0_2], %0 {strides = array<i32>} : memref<8x128xf32, #tpu.memory_space<vmem>>, vector<8x128xf32>,
    return
  }
  func.func @transform_0(%arg0: i32) -> (i32, i32) {
    %c0_i32 = arith.constant 0 : i32
    %c0_i32_0 = arith.constant 0 : i32
    %c0_i32_1 = arith.constant 0 : i32
    return %c0_i32, %c0_i32_0 : i32, i32
  }
  func.func @transform_1(%arg0: i32) -> (i32, i32) {
    %c0_i32 = arith.constant 0 : i32
    %c0_i32_0 = arith.constant 0 : i32
    %c0_i32_1 = arith.constant 0 : i32
    return %c0_i32, %c0_i32_0 : i32, i32
  }
}

module attributes {stable_mosaic.version = 11 : i64} {
  func.func @_matmul_stats_kernel(%arg0: i32, %arg1: i32, %arg2: memref<32x32xf32, #tpu.memory_space<vmem>>, %arg3: memref<32x128xf32, #tpu.memory_space<vmem>>, %arg4: memref<1x8x128xf32, #tpu.memory_space<vmem>>) attributes {dimension_semantics = [#tpu.dimension_semantics<parallel>, #tpu.dimension_semantics<parallel>], iteration_bounds = array<i64: 1, 8>, scalar_prefetch = 0 : i64, scratch_operands = 0 : i64, tpu.core_type = #tpu.core_type<tc>, window_params = [{transform_indices = @transform_0, window_bounds = array<i64: 32, 32>}, {transform_indices = @transform_1, window_bounds = array<i64: 32, 128>}, {transform_indices = @transform_2, window_bounds = array<i64: 1, 8, 128>}]} {
    %c32_i32 = arith.constant 32 : i32
    %0 = arith.muli %arg1, %c32_i32 : i32
    %1 = tpu.iota {dimensions = array<i32: 0>} : vector<32x1xi32>
    %2 = vector.broadcast %0 : i32 to vector<32x1xi32>
    %3 = arith.addi %2, %1 : vector<32x1xi32>
    %c256_i32 = arith.constant 256 : i32
    %4 = vector.broadcast %c256_i32 : i32 to vector<32x1xi32>
    %5 = arith.cmpi slt, %3, %4 : vector<32x1xi32>
    %c0 = arith.constant 0 : index
    %c0_0 = arith.constant 0 : index
    %6 = vector.load %arg2[%c0, %c0_0] : memref<32x32xf32, #tpu.memory_space<vmem>>, vector<32x32xf32>
    %c0_i32 = arith.constant 0 : i32
    %7 = arith.sitofp %c0_i32 : i32 to f32
    %8 = vector.shape_cast %5 : vector<32x1xi1> to vector<32x1xi1>
    %9 = vector.broadcast %8 : vector<32x1xi1> to vector<32x32xi1>
    %10 = vector.broadcast %7 : f32 to vector<32x32xf32>
    %11 = arith.select %9, %6, %10 : vector<32x32xi1>, vector<32x32xf32>
    %c0_1 = arith.constant 0 : index
    %c0_2 = arith.constant 0 : index
    %12 = vector.load %arg3[%c0_1, %c0_2] : memref<32x128xf32, #tpu.memory_space<vmem>>, vector<32x128xf32>
    %cst = arith.constant dense<0.000000e+00> : vector<32x128xf32>
    %13 = tpu.matmul %11, %12, %cst {dimension_numbers = #tpu.dot_dimension_numbers<[1], [0], [0], [1], [0, 0, 1, 1], [], []>} : vector<32x32xf32>, vector<32x128xf32>, vector<32x128xf32> -> vector<32x128xf32>
    %cst_3 = arith.constant dense<0.000000e+00> : vector<128xf32>
    %14 = vector.multi_reduction <add>, %13, %cst_3 [0] : vector<32x128xf32> to vector<128xf32>
    %15 = vector.shape_cast %14 : vector<128xf32> to vector<1x128xf32>
    %16 = arith.mulf %13, %13 : vector<32x128xf32>
    %cst_4 = arith.constant dense<0.000000e+00> : vector<128xf32>
    %17 = vector.multi_reduction <add>, %16, %cst_4 [0] : vector<32x128xf32> to vector<128xf32>
    %18 = vector.shape_cast %17 : vector<128xf32> to vector<1x128xf32>
    %19 = tpu.iota {dimensions = array<i32: 0>} : vector<8x128xi32>
    %c0_i32_5 = arith.constant 0 : i32
    %20 = vector.broadcast %c0_i32_5 : i32 to vector<8x128xi32>
    %21 = arith.cmpi eq, %19, %20 : vector<8x128xi32>
    %c1_i32 = arith.constant 1 : i32
    %22 = vector.broadcast %c1_i32 : i32 to vector<8x128xi32>
    %23 = arith.cmpi eq, %19, %22 : vector<8x128xi32>
    %cst_6 = arith.constant 0.000000e+00 : f32
    %24 = vector.shape_cast %18 : vector<1x128xf32> to vector<1x128xf32>
    %25 = vector.broadcast %24 : vector<1x128xf32> to vector<8x128xf32>
    %26 = vector.broadcast %cst_6 : f32 to vector<8x128xf32>
    %27 = arith.select %23, %25, %26 : vector<8x128xi1>, vector<8x128xf32>
    %28 = vector.shape_cast %15 : vector<1x128xf32> to vector<1x128xf32>
    %29 = vector.broadcast %28 : vector<1x128xf32> to vector<8x128xf32>
    %30 = arith.select %21, %29, %27 : vector<8x128xi1>, vector<8x128xf32>
    %c0_7 = arith.constant 0 : index
    %c0_8 = arith.constant 0 : index
    %c0_9 = arith.constant 0 : index
    %31 = vector.load %arg4[%c0_7, %c0_8, %c0_9] : memref<1x8x128xf32, #tpu.memory_space<vmem>>, vector<1x8x128xf32>
    %32 = vector.shape_cast %31 : vector<1x8x128xf32> to vector<8x128xf32>
    %33 = vector.shape_cast %30 : vector<8x128xf32> to vector<1x8x128xf32>
    tpu.vector_store %arg4[%c0_7, %c0_8, %c0_9], %33 {strides = array<i32>} : memref<1x8x128xf32, #tpu.memory_space<vmem>>, vector<1x8x128xf32>,
    return
  }
  func.func @transform_0(%arg0: i32, %arg1: i32) -> (i32, i32) {
    %c0_i32 = arith.constant 0 : i32
    %c0_i32_0 = arith.constant 0 : i32
    return %arg1, %c0_i32 : i32, i32
  }
  func.func @transform_1(%arg0: i32, %arg1: i32) -> (i32, i32) {
    %c0_i32 = arith.constant 0 : i32
    %c0_i32_0 = arith.constant 0 : i32
    return %c0_i32, %arg0 : i32, i32
  }
  func.func @transform_2(%arg0: i32, %arg1: i32) -> (i32, i32, i32) {
    %c0_i32 = arith.constant 0 : i32
    %c0_i32_0 = arith.constant 0 : i32
    return %arg1, %c0_i32, %arg0 : i32, i32, i32
  }
}

</mosaic_0001>

<llo_original>
// kernel: tpu_custom_call.1
$region0: #{tpu_custom_call.1}
  #allocation0 [shape = 'u32[]', space=smem, size = 0x4, offset = 0x4, fixed_abs, tag = 'smem constant byte address 0x4 - core index']
  #allocation1 [shape = 'u32[72,128]{1,0:T(1,128)}', space=vmem, size = 0x9000, scoped, tag = 'internal scratch']
  %s0 = inlined_call_operand.hbm [shape: f32[8,128], index: 0, kind: input, shape index: {}]
  %s1 = inlined_call_operand.hbm [shape: f32[8,128], index: 1, kind: output, shape index: {}]
  %s2 = sld [smem:[#allocation0]]
  $region18: #{tpu_custom_call.1} parent=0
    _
  %s4 = ssub.s32 1, %s2
  %s5 = scalar_select 0, %s4, %s2
  $region1: #{tpu_custom_call.1} parent=0
    #allocation2 [shape = 'u8[4096]{0}', space=vmem, size = 0x1000, scoped, tag = 'input window, operand 0, single buffered']
    #allocation3 [shape = 's32[1]{0}', space=sflag, size = 0x4, scoped, tag = 'scoped memory for tpu_custom_call.1']
    #allocation4 [shape = 's32[1]{0}', space=sflag, size = 0x4, scoped, tag = 'scoped memory for tpu_custom_call.1']
    #allocation5 [shape = 'u8[4096]{0}', space=vmem, size = 0x1000, scoped, tag = 'output window, operand 0, single buffered']
    %6 = vsyncpa [#allocation3], 0
    %7 = vsyncpa [#allocation4], 0
    // Predicated region
    $region2: #{tpu_custom_call.1} parent=1 // pred_check
      _
    $region3: #{tpu_custom_call.1} parent=1 // pred_check_branch
      %9 = sbr.rel (0) target = $region5
    $region4: #{tpu_custom_call.1} parent=1 // pred_region
      %11 = vsyncadd [#allocation3], 0
      %s13 = sshll.u32 %s0, 4
      %s14 = int_to_ptr.hbm [resolvable:$true] %s13
      %s15 = sshll.u32 [#allocation2], 4
      %s16 = int_to_ptr.vmem [resolvable:$true] %s15
      %18 = dma.hbm_to_vmem [thread:$0]  %s14, 128, %s16, [#allocation3]
    $region5: #{tpu_custom_call.1} parent=1 // pred_fallthru
      _
    // Predicated region
    $region6: #{tpu_custom_call.1} parent=1 // pred_check
      _
    $region7: #{tpu_custom_call.1} parent=1 // pred_check_branch
      %20 = sbr.rel (0) target = $region9
    $region8: #{tpu_custom_call.1} parent=1 // pred_region
      %22 = dma.done [#allocation3], 128
    $region9: #{tpu_custom_call.1} parent=1 // pred_fallthru
      _
    %v23 = vld [vmem:[#allocation2] sm:$0xff]
    %24 = vst [vmem:[#allocation5] sm:$0xff] %v23
    // Predicated region
    $region10: #{tpu_custom_call.1} parent=1 // pred_check
      _
    $region11: #{tpu_custom_call.1} parent=1 // pred_check_branch
      %26 = sbr.rel (0) target = $region13
    $region12: #{tpu_custom_call.1} parent=1 // pred_region
      %28 = vsyncadd [#allocation4], 0
      %s30 = sshll.u32 [#allocation5], 4
      %s31 = int_to_ptr.vmem [resolvable:$true] %s30
      %s32 = sshll.u32 %s1, 4
      %s33 = int_to_ptr.hbm [resolvable:$true] %s32
      %35 = dma.vmem_to_hbm [thread:$0]  %s31, 128, %s33, [#allocation4]
    $region13: #{tpu_custom_call.1} parent=1 // pred_fallthru
      _
    // Predicated region
    $region14: #{tpu_custom_call.1} parent=1 // pred_check
      _
    $region15: #{tpu_custom_call.1} parent=1 // pred_check_branch
      %37 = sbr.rel (0) target = $region17
    $region16: #{tpu_custom_call.1} parent=1 // pred_region
      %39 = dma.done [#allocation4], 128
    $region17: #{tpu_custom_call.1} parent=1 // pred_fallthru
      _
    %40 = vsyncpa [#allocation3], 1
    %41 = vsyncpa [#allocation4], 1

// kernel: tpu_custom_call.1
$region0: #{tpu_custom_call.1}
  #allocation0 [shape = 'u32[]', space=smem, size = 0x4, offset = 0x4, fixed_abs, tag = 'smem constant byte address 0x4 - core index']
  #allocation1 [shape = 'u32[72,128]{1,0:T(1,128)}', space=vmem, size = 0x9000, scoped, tag = 'internal scratch']
  %s0 = inlined_call_operand.vmem [shape: f32[256,32], index: 0, kind: input, shape index: {}]
  %s1 = inlined_call_operand.vmem [shape: f32[32,128], index: 1, kind: input, shape index: {}]
  %s2 = inlined_call_operand.hbm [shape: f32[8,8,128], index: 2, kind: output, shape index: {}]
  %s3 = sld [smem:[#allocation0]]
  $region41: #{tpu_custom_call.1} parent=0
    _
  %s5 = ssub.s32 1, %s3
  %s6 = scalar_select 0, %s5, %s3
  $region1: #{tpu_custom_call.1} parent=0
    #allocation2 [shape = 'u8[8192]{0}', space=vmem, size = 0x2000, scoped, tag = 'output window, operand 0']
    #allocation3 [shape = 's32[2]{0}', space=sflag, size = 0x8, scoped, tag = 'scoped memory for tpu_custom_call.1']
    %7 = vsyncpa [#allocation3], 0
    %s8 = scalar_lea.sflag [#allocation3], 1
    %9 = vsyncpa %s8, 0
    loop: start=0, step=1, limit=10
    $region2: #{tpu_custom_call.1} parent=1 // loop_pre_header
      _
    $region3: #{tpu_custom_call.1} parent=1 // loop_header
      %s11 = sphi 0, %s15
      %p12 = scmp.ge.s32.totalorder %s11, 10
      %s18 = sphi 0, %s30
      %s19 = sphi 0, %s26
      %s20 = sphi 0, %s18
      %s21 = sphi 0, %s19
      %s22 = sphi 0, %s20
      %s23 = sphi 0, %s21
      %s33 = sphi 0, %s35
      %s36 = sphi 0, %s33
      %s37 = sphi 0, %s36
      %s53 = sphi 0, %s37
      %s59 = sphi 0, %s61
      %s62 = sphi 0, %s59
      %s63 = sphi 0, %s62
      %s79 = sphi 0, %s63
      %s87 = sphi 0, %s89
      %s90 = sphi 0, %s87
      %s91 = sphi 0, %s90
      %s107 = sphi 0, %s91
    $region4: #{tpu_custom_call.1} parent=1 // loop_header_branch
      %14 = sbr.rel (%p12) target = $region8
    $region5: #{tpu_custom_call.1} parent=1 // loop_body
      %s16 = ssub.s32 %s11, 1
      %s17 = ssub.s32 %s11, 2
      %s24 = sadd.s32 1, %s19
      %p25 = scmp.ge.s32.totalorder %s24, 8
      %s26 = scalar_select %p25, 0, %s24
      %s27 = sadd.s32 1, %s18
      %s28 = scalar_select %p25, %s27, %s18
      %p29 = scmp.ge.s32.totalorder %s28, 1
      %s30 = scalar_select %p29, 0, %s28
      %s31 = ssub.s32 %s19, %s26
      %p32 = scmp.eq.s32.totalorder %s31, 0
      %s34 = sadd.s32 %s33, 1
      %s35 = scalar_select %p32, %s33, %s34
      %p38 = pneg %p32
      %p39 = scmp.eq.s32.totalorder %s11, 7
      %p40 = por %p38, %p39
      %p41 = scmp.ne.s32.totalorder %s33, %s36
      %p42 = scmp.eq.s32.totalorder %s11, 0
      %p43 = por %p41, %p42
      %p44 = scmp.ne.s32.totalorder %s33, %s36
      %p45 = scmp.eq.s32.totalorder %s16, 7
      %p46 = por %p44, %p45
      %p47 = scmp.ne.s32.totalorder %s36, %s37
      %p48 = scmp.eq.s32.totalorder %s16, 0
      %p49 = por %p47, %p48
      %p50 = scmp.ne.s32.totalorder %s36, %s37
      %p51 = scmp.eq.s32.totalorder %s17, 7
      %p52 = por %p50, %p51
      %p54 = scmp.ne.s32.totalorder %s37, %s53
      %p55 = scmp.eq.s32.totalorder %s17, 0
      %p56 = por %p54, %p55
      %s57 = ssub.s32 %s18, %s30
      %p58 = scmp.eq.s32.totalorder %s57, 0
      %s60 = sadd.s32 %s59, 1
      %s61 = scalar_select %p58, %s59, %s60
      %p64 = pneg %p58
      %p65 = scmp.eq.s32.totalorder %s11, 7
      %p66 = por %p64, %p65
      %p67 = scmp.ne.s32.totalorder %s59, %s62
      %p68 = scmp.eq.s32.totalorder %s11, 0
      %p69 = por %p67, %p68
      %p70 = scmp.ne.s32.totalorder %s59, %s62
      %p71 = scmp.eq.s32.totalorder %s16, 7
      %p72 = por %p70, %p71
      %p73 = scmp.ne.s32.totalorder %s62, %s63
      %p74 = scmp.eq.s32.totalorder %s16, 0
      %p75 = por %p73, %p74
      %p76 = scmp.ne.s32.totalorder %s62, %s63
      %p77 = scmp.eq.s32.totalorder %s17, 7
      %p78 = por %p76, %p77
      %p80 = scmp.ne.s32.totalorder %s63, %s79
      %p81 = scmp.eq.s32.totalorder %s17, 0
      %p82 = por %p80, %p81
      %s83 = ssub.s32 %s19, %s26
      %s84 = ssub.s32 %s18, %s30
      %s85 = sor.u32 %s83, %s84
      %p86 = scmp.eq.s32.totalorder %s85, 0
      %s88 = sadd.s32 %s87, 1
      %s89 = scalar_select %p86, %s87, %s88
      %p92 = pneg %p86
      %p93 = scmp.eq.s32.totalorder %s11, 7
      %p94 = por %p92, %p93
      %p95 = scmp.ne.s32.totalorder %s87, %s90
      %p96 = scmp.eq.s32.totalorder %s11, 0
      %p97 = por %p95, %p96
      %p98 = scmp.ne.s32.totalorder %s87, %s90
      %p99 = scmp.eq.s32.totalorder %s16, 7
      %p100 = por %p98, %p99
      %p101 = scmp.ne.s32.totalorder %s90, %s91
      %p102 = scmp.eq.s32.totalorder %s16, 0
      %p103 = por %p101, %p102
      %p104 = scmp.ne.s32.totalorder %s90, %s91
      %p105 = scmp.eq.s32.totalorder %s17, 7
      %p106 = por %p104, %p105
      %p108 = scmp.ne.s32.totalorder %s91, %s107
      %p109 = scmp.eq.s32.totalorder %s17, 0
      %p110 = por %p108, %p109
      %p111 = scmp.le.s32.totalorder 1, %s11
      %p112 = scmp.lt.s32.totalorder %s11, 9
      %p113 = pnand %p111, %p112
      %p114 = pneg %p113
      // Predicated region
      $region9: #{tpu_custom_call.1} parent=5 // pred_check
        _
      $region10: #{tpu_custom_call.1} parent=5 // pred_check_branch
        %116 = sbr.rel (%p113) target = $region12
      $region11: #{tpu_custom_call.1} parent=5 // pred_region
        %s117 = ssub.s32 %s11, 1
        // Predicated region
        $region13: #{tpu_custom_call.1} parent=11 // pred_check
          %p118 = pneg %p75
        $region14: #{tpu_custom_call.1} parent=11 // pred_check_branch
          %120 = sbr.rel (%p118) target = $region16
        $region15: #{tpu_custom_call.1} parent=11 // pred_region
          %p121 = scmp.lt.s32.totalorder %s20, 0
          %s122 = scalar_select %p121, %s20, 0
          %s123 = smul.addr %s122, 8
          %s124 = scalar_lea.vmem %s1, %s123
        $region16: #{tpu_custom_call.1} parent=11 // pred_fallthru
          _
      $region12: #{tpu_custom_call.1} parent=5 // pred_fallthru
        _
      %p125 = scmp.lt.s32.totalorder %s11, 8
      // Predicated region
      $region17: #{tpu_custom_call.1} parent=5 // pred_check
        %p126 = pneg %p125
      $region18: #{tpu_custom_call.1} parent=5 // pred_check_branch
        %128 = sbr.rel (%p126) target = $region20
      $region19: #{tpu_custom_call.1} parent=5 // pred_region
        // Predicated region
        $region21: #{tpu_custom_call.1} parent=19 // pred_check
          %p129 = pneg %p43
        $region22: #{tpu_custom_call.1} parent=19 // pred_check_branch
          %131 = sbr.rel (%p129) target = $region24
        $region23: #{tpu_custom_call.1} parent=19 // pred_region
          %s132 = smul.u32 4, %s19
          %p133 = scmp.lt.s32.totalorder %s132, 31
          %s134 = scalar_select %p133, %s132, 31
          %s135 = smul.addr %s134, 8
          %s136 = scalar_lea.vmem %s0, %s135
          %s137 = smul.u32 4, %s19
        $region24: #{tpu_custom_call.1} parent=19 // pred_fallthru
          _
      $region20: #{tpu_custom_call.1} parent=5 // pred_fallthru
        _
      %p138 = scmp.le.s32.totalorder 1, %s11
      %p139 = scmp.lt.s32.totalorder %s11, 9
      %p140 = pnand %p138, %p139
      %p141 = pneg %p140
      // Predicated region
      $region25: #{tpu_custom_call.1} parent=5 // pred_check
        _
      $region26: #{tpu_custom_call.1} parent=5 // pred_check_branch
        %143 = sbr.rel (%p140) target = $region28
      $region27: #{tpu_custom_call.1} parent=5 // pred_region
        %s144 = ssub.s32 %s11, 1
        %s145 = smul.u32 4, %s21
        %p146 = scmp.lt.s32.totalorder %s145, 31
        %s147 = scalar_select %p146, %s145, 31
        %s148 = smul.addr %s147, 8
        %s149 = scalar_lea.vmem %s0, %s148
        %p150 = pneg %p49
        %p151 = pneg %p46
        %p152 = scmp.lt.s32.totalorder %s20, 0
        %s153 = scalar_select %p152, %s20, 0
        %s154 = smul.addr %s153, 8
        %s155 = scalar_lea.vmem %s1, %s154
        %p156 = pneg %p75
        %p157 = pneg %p72
        %p158 = pneg %p103
        %p159 = pneg %p100
        %s160 = sand.u32 %s90, 1
        %s161 = scalar_lea.sflag [#allocation3], %s160
        %s162 = sand.u32 %s90, 1
        %s163 = smul.addr %s162, 8
        %s164 = scalar_lea.vmem [#allocation2], %s163
        %s165 = smul.u32 4, %s21
        %p166 = scmp.lt.s32.totalorder %s165, 31
        %s167 = scalar_select %p166, %s165, 31
        %s168 = smul.addr %s167, 8
        %s169 = scalar_lea.vmem %s0, %s168
        %s170 = smul.u32 4, %s21
        %p171 = scmp.lt.s32.totalorder %s20, 0
        %s172 = scalar_select %p171, %s20, 0
        %s173 = smul.addr %s172, 8
        %s174 = scalar_lea.vmem %s1, %s173
        %s175 = smul.u32 %s21, 32
        %v176 = vlaneseq
        %v177 = vshrl.u32 %v176, 7
        %v178 = vadd.s32 %v177, 8
        %v179 = vadd.s32 %v177, 16
        %v180 = vadd.s32 %v177, 24
        %v181 = vstv %s175
        %v182 = vadd.s32 %v181, %v177
        %v183 = vadd.s32 %v181, %v178
        %v184 = vadd.s32 %v181, %v179
        %v185 = vadd.s32 %v181, %v180
        %vm186 = vcmp.lt.s32.totalorder %v182, 256
        %vm187 = vcmp.lt.s32.totalorder %v183, 256
        %vm188 = vcmp.lt.s32.totalorder %v184, 256
        %vm189 = vcmp.lt.s32.totalorder %v185, 256
        %v190 = vld [vmem:[%s169] sm:$0xff]
        %v191 = vld [vmem:[%s169 + $0x8] sm:$0xff]
        %v192 = vld [vmem:[%s169 + $0x10] sm:$0xff]
        %v193 = vld [vmem:[%s169 + $0x18] sm:$0xff]
        %v194 = vsel %vm186, 1, 0
        %v195 = vsel %vm187, 1, 0
        %v196 = vsel %vm188, 1, 0
        %v197 = vsel %vm189, 1, 0
        %vm198 = vcmp.eq.s32.totalorder %v194, 1
        %vm199 = vcmp.eq.s32.totalorder %v195, 1
        %vm200 = vcmp.eq.s32.totalorder %v196, 1
        %vm201 = vcmp.eq.s32.totalorder %v197, 1
        %v202 = vsel %vm198, %v190, 0.0
        %v203 = vsel %vm199, %v191, 0.0
        %v204 = vsel %vm200, %v192, 0.0
        %v205 = vsel %vm201, %v193, 0.0
        %v206 = vld [vmem:[%s174] sm:$0xff]
        %v207 = vld [vmem:[%s174 + $0x8] sm:$0xff]
        %v208 = vld [vmem:[%s174 + $0x10] sm:$0xff]
        %v209 = vld [vmem:[%s174 + $0x18] sm:$0xff]
        %vm210 = vcmask 261120
        %v212 = vsel %vm210, %v202, 0
        %v215 = vsel %vm210, %v203, 0
        %v218 = vsel %vm210, %v204, 0
        %v221 = vsel %vm210, %v205, 0
        %223 = vmatpush.msra.mxu0 0.0
        %224 = vmatpush.msra.mxu0 0.0
        %225 = vmatpush.msra.mxu0 0.0
        %226 = vmatpush.msra.mxu0 0.0
        %227 = vmatpush.msra.mxu0 0.0
        %228 = vmatpush.msra.mxu0 0.0
        %229 = vmatpush.msra.mxu0 0.0
        %230 = vmatpush.msra.mxu0 0.0
        %231 = vmatpush.msra.mxu0 0.0
        %232 = vmatpush.msra.mxu0 0.0
        %233 = vmatpush.msra.mxu0 0.0
        %234 = vmatpush.msra.mxu0 0.0
        %235 = vmatpush.msra.mxu0 %v209
        %236 = vmatpush.msra.mxu0 %v208
        %237 = vmatpush.msra.mxu0 %v207
        %238 = vmatpush.msra.mxu0 %v206
        %239 = vmatmul.f32.gmra.mxu0 %v212
        %v240 = vpop.f32.mrf.mxu0
        %v241 = vadd.f32 0.0, %v240
        %242 = vmatmul.f32.gmra.mxu0 %v215
        %v243 = vpop.f32.mrf.mxu0
        %v244 = vadd.f32 0.0, %v243
        %245 = vmatmul.f32.gmra.mxu0 %v218
        %v246 = vpop.f32.mrf.mxu0
        %v247 = vadd.f32 0.0, %v246
        %248 = vmatmul.f32.gmra.mxu0 %v221
        %v249 = vpop.f32.mrf.mxu0
        %v250 = vadd.f32 0.0, %v249
        %251 = vdwg.mxu0
        %v252 = vadd.f32 %v241, %v244
        %v253 = vadd.f32 %v252, %v247
        %v254 = vadd.f32 %v253, %v250
        %v255 = vrot.slane %v254, 4
        %v256 = vadd.f32 %v254, %v255
        %v257 = vrot.slane %v256, 2
        %v258 = vadd.f32 %v256, %v257
        %v259 = vrot.slane %v258, 1
        %v260 = vadd.f32 %v258, %v259
        %v261 = vmul.f32 %v241, %v241
        %v262 = vmul.f32 %v244, %v244
        %v263 = vmul.f32 %v247, %v247
        %v264 = vmul.f32 %v250, %v250
        %v265 = vadd.f32 %v261, %v262
        %v266 = vadd.f32 %v265, %v263
        %v267 = vadd.f32 %v266, %v264
        %v268 = vrot.slane %v267, 4
        %v269 = vadd.f32 %v267, %v268
        %v270 = vrot.slane %v269, 2
        %v271 = vadd.f32 %v269, %v270
        %v272 = vrot.slane %v271, 1
        %v273 = vadd.f32 %v271, %v272
        %vm274 = vcmp.eq.s32.totalorder %v177, 0
        %vm275 = vcmp.eq.s32.totalorder %v177, 1
        %v276 = vsel %vm275, %v273, 0.0
        %v277 = vsel %vm274, %v260, %v276
        %278 = vst [vmem:[%s164] sm:$0xff] %v277
        %s279 = sand.u32 %s90, 1
        %s280 = scalar_lea.sflag [#allocation3], %s279
        %s281 = sand.u32 %s90, 1
        %s282 = smul.addr %s281, 8
        %s283 = scalar_lea.vmem [#allocation2], %s282
        // Predicated region
        $region29: #{tpu_custom_call.1} parent=27 // pred_check
          %p284 = pneg %p100
        $region30: #{tpu_custom_call.1} parent=27 // pred_check_branch
          %286 = sbr.rel (%p284) target = $region32
        $region31: #{tpu_custom_call.1} parent=27 // pred_region
          %288 = vsyncadd %s280, 0
          %s289 = sadd.s32 %s20, %s21
          %s290 = smul.addr %s289, 8
          %s291 = scalar_lea.hbm %s2, %s290
          %s293 = sshll.u32 %s283, 4
          %s294 = int_to_ptr.vmem [resolvable:$true] %s293
          %s295 = sshll.u32 %s291, 4
          %s296 = int_to_ptr.hbm [resolvable:$true] %s295
          %298 = dma.vmem_to_hbm [thread:$0]  %s294, 128, %s296, %s280
        $region32: #{tpu_custom_call.1} parent=27 // pred_fallthru
          _
      $region28: #{tpu_custom_call.1} parent=5 // pred_fallthru
        _
      %p299 = scmp.le.s32.totalorder 2, %s11
      // Predicated region
      $region33: #{tpu_custom_call.1} parent=5 // pred_check
        %p300 = pneg %p299
      $region34: #{tpu_custom_call.1} parent=5 // pred_check_branch
        %302 = sbr.rel (%p300) target = $region36
      $region35: #{tpu_custom_call.1} parent=5 // pred_region
        %s303 = ssub.s32 %s11, 2
        // Predicated region
        $region37: #{tpu_custom_call.1} parent=35 // pred_check
          %p304 = pneg %p106
        $region38: #{tpu_custom_call.1} parent=35 // pred_check_branch
          %306 = sbr.rel (%p304) target = $region40
        $region39: #{tpu_custom_call.1} parent=35 // pred_region
          %s307 = sand.u32 %s91, 1
          %s308 = scalar_lea.sflag [#allocation3], %s307
          %s309 = sand.u32 %s91, 1
          %s310 = smul.addr %s309, 8
          %s311 = scalar_lea.vmem [#allocation2], %s310
          %313 = dma.done %s308, 128
        $region40: #{tpu_custom_call.1} parent=35 // pred_fallthru
          _
      $region36: #{tpu_custom_call.1} parent=5 // pred_fallthru
        _
    $region6: #{tpu_custom_call.1} parent=1 // loop_footer
      %s15 = sadd.s32 1, %s11
    $region7: #{tpu_custom_call.1} parent=1 // loop_footer_branch
      %10 = sbr.rel target = $region3
    $region8: #{tpu_custom_call.1} parent=1 // loop_exit
      _
    %314 = vsyncpa [#allocation3], 1
    %s315 = scalar_lea.sflag [#allocation3], 1
    %316 = vsyncpa %s315, 1

</llo_original>
